<compile_context>
chip_gen: v7x
topology: tpu7x:2x2x1
jax: 0.10.0
libtpu: 0.0.40
codegen_flags: <defaults>
</compile_context>

<pallas_src>
import functools
import math

import jax
import jax.numpy as jnp
from jax import lax
from jax.experimental import pallas as pl
from jax.experimental.pallas import tpu as pltpu

_MIB = 1024 * 1024


def _downsample_kernel(x_ref, w_ref, b_ref, o_ref, *, nb):
    # x_ref: (nb, L, 4*Cin)  patch rows, lanes ordered (kh, kw, cin)
    # w_ref: (Cout, 4*Cin)   weights in the same lane order
    # b_ref: (Cout, 1)       float32 bias
    # o_ref: (nb, Cout, L)   lane-dense slab of the NCHW-order output
    w = w_ref[...]
    b = b_ref[...]
    dn = (((1,), (1,)), ((), ()))  # contract the 4*Cin dim of both operands
    for i in range(nb):            # nb is small & static (unrolled)
        acc = lax.dot_general(w, x_ref[i], dn,
                              preferred_element_type=jnp.float32)
        o_ref[i] = (acc + b).astype(o_ref.dtype)


def _round_up(x, m):
    return ((x + m - 1) // m) * m


def _vmem_capacity_bytes():
    """Physical VMEM per TensorCore; v7x-safe fallback if the query fails."""
    try:
        info = pltpu.get_tpu_info()
        cap = getattr(info, "vmem_capacity_bytes", None)
        if cap:
            return int(cap)
    except Exception:
        pass
    return 64 * _MIB


def _pick_tiling(N, S, K4, Cout, in_bytes, out_bytes, vmem_cap):
    """Choose (nb images per block, L spatial positions per block, vmem_limit)."""
    # Soft budget for pipelined blocks + temporaries: ~45% of physical VMEM
    # (v7x: ~28 MiB of 64; v5e/v6e: 56 MiB of 128), leaving headroom for the
    # compiler's own scratch and the resident weights.
    budget = min(int(vmem_cap * 0.45), 56 * _MIB)

    pad_k = _round_up(K4, 128)          # lane padding of the (thin) channel dim
    pad_co = max(8, _round_up(Cout, 8))  # sublane padding of the output rows

    per_pos = (2 * pad_k * in_bytes      # double-buffered input block
               + 2 * pad_co * out_bytes)  # double-buffered output block
    acc_per_pos = 2 * pad_co * 4         # f32 accumulator temporaries (safety x2)
    pp = per_pos + acc_per_pos

    l_cap = max(128, (budget // pp) // 128 * 128)
    if S <= l_cap:
        L = S
        nb_cap = max(1, budget // max(1, S * pp))
        nb = int(min(N, nb_cap, 8))      # cap unrolled in-kernel loop length
    else:
        L = int(min(l_cap, _round_up(S, 128)))
        nb = 1

    # Keep >= 2 grid steps when possible so both v7x TensorCores get work.
    if pl.cdiv(N, nb) * pl.cdiv(S, L) == 1:
        if N > 1:
            nb = max(1, (N + 1) // 2)
        elif S >= 256:
            L = max(128, _round_up(S // 2, 128))

    # VMEM limit derived from the actual chosen blocks (+ weights + slack).
    w_bytes = 2 * pad_co * pad_k * in_bytes + 2 * pad_co * 128 * 4
    need = nb * L * pp + w_bytes
    vmem_limit = max(32 * _MIB, need + 16 * _MIB)
    vmem_limit = int(min(vmem_limit, int(vmem_cap * 0.9)))
    return nb, L, vmem_limit


def downsample_forward(x, weight, bias, *, compute_dtype=None,
                       fuse_input_relayout=False, interpret=False):
    """Conv2d(in_ch, out_ch, kernel_size=2, stride=2, padding=0).

    x:      (N, C_in, H, W)      -- NCHW, like PyTorch
    weight: (C_out, C_in, 2, 2)  -- OIHW, like PyTorch
    bias:   (C_out,)
    returns (N, C_out, H//2, W//2)

    compute_dtype: e.g. jnp.bfloat16 on v6e/v7x to halve the dominant HBM read
    traffic (accumulation stays float32; output keeps x.dtype).
    """
    N, Cin, H, W = x.shape
    Cout = weight.shape[0]
    assert weight.shape == (Cout, Cin, 2, 2), weight.shape
    assert H % 2 == 0 and W % 2 == 0, "DownSample expects even spatial dims"
    Ho, Wo = H // 2, W // 2
    S = Ho * Wo
    K4 = 4 * Cin

    in_dtype = jnp.dtype(compute_dtype) if compute_dtype is not None else x.dtype
    out_dtype = x.dtype

    # The single activation relayout pass: NCHW -> (N, Ho*Wo, 4*Cin) patch
    # matrix, lanes ordered (kh, kw, cin).  Everything after this is a free
    # metadata reshape (wrapper side) or a plain matmul (kernel side).
    xr = x.reshape(N, Cin, Ho, 2, Wo, 2)
    xr = jnp.transpose(xr, (0, 2, 4, 3, 5, 1))      # (N, Ho, Wo, kh, kw, Cin)
    xr = xr.reshape(N, S, K4).astype(in_dtype)

    # weight OIHW -> (Cout, kh, kw, Cin) -> (Cout, 4*Cin): same lane order.
    w2 = jnp.transpose(weight, (0, 2, 3, 1)).reshape(Cout, K4).astype(in_dtype)
    b2 = bias.reshape(Cout, 1).astype(jnp.float32)

    in_b = jnp.dtype(in_dtype).itemsize
    out_b = jnp.dtype(out_dtype).itemsize
    vmem_cap = _vmem_capacity_bytes()
    nb, L, vmem_limit = _pick_tiling(N, S, K4, Cout, in_b, out_b, vmem_cap)

    grid = (pl.cdiv(N, nb), pl.cdiv(S, L))
    kernel = functools.partial(_downsample_kernel, nb=nb)

    flops = 2 * N * S * K4 * Cout
    bytes_accessed = (N * S * K4 * in_b        # activations (read once)
                      + Cout * K4 * in_b       # weights
                      + Cout * 4               # bias
                      + N * Cout * S * out_b)  # output

    compiler_params = pltpu.CompilerParams(
        dimension_semantics=("parallel", "parallel"),
        vmem_limit_bytes=vmem_limit,
        allow_input_fusion=([True, False, False] if fuse_input_relayout else None),
    )

    out = pl.pallas_call(
        kernel,
        out_shape=jax.ShapeDtypeStruct((N, Cout, S), out_dtype),
        grid_spec=pltpu.PrefetchScalarGridSpec(
            num_scalar_prefetch=0,
            grid=grid,
            in_specs=[
                pl.BlockSpec((nb, L, K4), lambda n, j: (n, j, 0)),
                pl.BlockSpec((Cout, K4), lambda n, j: (0, 0)),
                pl.BlockSpec((Cout, 1), lambda n, j: (0, 0)),
            ],
            out_specs=pl.BlockSpec((nb, Cout, L), lambda n, j: (n, 0, j)),
        ),
        compiler_params=compiler_params,
        cost_estimate=pl.CostEstimate(
            flops=flops, transcendentals=0, bytes_accessed=bytes_accessed),
        interpret=interpret,
    )(xr, w2, b2)

    # Kernel already produced NCHW memory order; this reshape is free.
    return out.reshape(N, Cout, Ho, Wo)


if __name__ == "__main__":
    key = jax.random.PRNGKey(0)
    k_x, k_w, k_b = jax.random.split(key, 3)

    N, Cin, Cout, H, W = 2, 4, 8, 16, 16

    x = jax.random.normal(k_x, (N, Cin, H, W), dtype=jnp.float32)
    fan_in = Cin * 2 * 2
    bound = 1.0 / (fan_in ** 0.5)
    weight = jax.random.uniform(k_w, (Cout, Cin, 2, 2), jnp.float32,
                                minval=-bound, maxval=bound)
    bias = jax.random.uniform(k_b, (Cout,), jnp.float32,
                              minval=-bound, maxval=bound)

    # Pallas kernel (f32 path, matches PyTorch numerics).
    y = downsample_forward(x, weight, bias)
    jax.block_until_ready(y)

    # Reference: XLA conv (NCHW / OIHW, stride 2, no padding) + bias.
    y_ref = lax.conv_general_dilated(
        x, weight, window_strides=(2, 2), padding="VALID",
        dimension_numbers=("NCHW", "OIHW", "NCHW"))
    y_ref = y_ref + bias.reshape(1, Cout, 1, 1)

    assert y.shape == (N, Cout, H // 2, W // 2), y.shape
    assert jnp.allclose(y, y_ref, atol=1e-5, rtol=1e-5), float(
        jnp.max(jnp.abs(y - y_ref)))

    # bf16 activation/weight path (recommended on v6e/v7x): f32 accumulation,
    # loose tolerance because inputs are cast to bf16 before the MXU.
    y_bf16 = downsample_forward(x, weight, bias, compute_dtype=jnp.bfloat16)
    jax.block_until_ready(y_bf16)
    assert jnp.allclose(y_bf16, y_ref, atol=5e-2, rtol=5e-2), float(
        jnp.max(jnp.abs(y_bf16 - y_ref)))

    print("KERNEL_OK")
</pallas_src>

<mosaic_0001>
module attributes {stable_mosaic.version = 11 : i64} {
  func.func @_downsample_kernel(%arg0: i32, %arg1: i32, %arg2: memref<1x64x16xf32, #tpu.memory_space<vmem>>, %arg3: memref<8x16xf32, #tpu.memory_space<vmem>>, %arg4: memref<8x1xf32, #tpu.memory_space<vmem>>, %arg5: memref<1x8x64xf32, #tpu.memory_space<vmem>>) attributes {dimension_semantics = [#tpu.dimension_semantics<parallel>, #tpu.dimension_semantics<parallel>], iteration_bounds = array<i64: 2, 1>, scalar_prefetch = 0 : i64, scratch_operands = 0 : i64, tpu.core_type = #tpu.core_type<tc>, window_params = [{transform_indices = @transform_0, window_bounds = array<i64: 1, 64, 16>}, {pipeline_mode = #tpu.pipeline_mode<synchronous>, transform_indices = @transform_1, window_bounds = array<i64: 8, 16>}, {pipeline_mode = #tpu.pipeline_mode<synchronous>, transform_indices = @transform_2, window_bounds = array<i64: 8, 1>}, {transform_indices = @transform_3, window_bounds = array<i64: 1, 8, 64>}]} {
    %c0 = arith.constant 0 : index
    %c0_0 = arith.constant 0 : index
    %0 = vector.load %arg3[%c0, %c0_0] : memref<8x16xf32, #tpu.memory_space<vmem>>, vector<8x16xf32>
    %c0_1 = arith.constant 0 : index
    %c0_2 = arith.constant 0 : index
    %1 = vector.load %arg4[%c0_1, %c0_2] : memref<8x1xf32, #tpu.memory_space<vmem>>, vector<8x1xf32>
    %c0_3 = arith.constant 0 : index
    %c0_4 = arith.constant 0 : index
    %c0_5 = arith.constant 0 : index
    %2 = vector.load %arg2[%c0_3, %c0_4, %c0_5] : memref<1x64x16xf32, #tpu.memory_space<vmem>>, vector<1x64x16xf32>
    %3 = vector.shape_cast %2 : vector<1x64x16xf32> to vector<64x16xf32>
    %cst = arith.constant dense<0.000000e+00> : vector<8x64xf32>
    %4 = tpu.matmul %0, %3, %cst {dimension_numbers = #tpu.dot_dimension_numbers<[1], [1], [0], [0], [0, 0, 1, 0], [], []>} : vector<8x16xf32>, vector<64x16xf32>, vector<8x64xf32> -> vector<8x64xf32>
    %5 = vector.broadcast %1 : vector<8x1xf32> to vector<8x64xf32>
    %6 = arith.addf %4, %5 : vector<8x64xf32>
    %c0_6 = arith.constant 0 : index
    %c0_7 = arith.constant 0 : index
    %c0_8 = arith.constant 0 : index
    %7 = vector.load %arg5[%c0_6, %c0_7, %c0_8] : memref<1x8x64xf32, #tpu.memory_space<vmem>>, vector<1x8x64xf32>
    %8 = vector.shape_cast %7 : vector<1x8x64xf32> to vector<8x64xf32>
    %9 = vector.shape_cast %6 : vector<8x64xf32> to vector<1x8x64xf32>
    tpu.vector_store %arg5[%c0_6, %c0_7, %c0_8], %9 {strides = array<i32>} : memref<1x8x64xf32, #tpu.memory_space<vmem>>, vector<1x8x64xf32>,
    return
  }
  func.func @transform_0(%arg0: i32, %arg1: i32) -> (i32, i32, i32) {
    %c0_i32 = arith.constant 0 : i32
    %c0_i32_0 = arith.constant 0 : i32
    return %arg0, %arg1, %c0_i32 : i32, i32, i32
  }
  func.func @transform_1(%arg0: i32, %arg1: i32) -> (i32, i32) {
    %c0_i32 = arith.constant 0 : i32
    %c0_i32_0 = arith.constant 0 : i32
    %c0_i32_1 = arith.constant 0 : i32
    return %c0_i32, %c0_i32_0 : i32, i32
  }
  func.func @transform_2(%arg0: i32, %arg1: i32) -> (i32, i32) {
    %c0_i32 = arith.constant 0 : i32
    %c0_i32_0 = arith.constant 0 : i32
    %c0_i32_1 = arith.constant 0 : i32
    return %c0_i32, %c0_i32_0 : i32, i32
  }
  func.func @transform_3(%arg0: i32, %arg1: i32) -> (i32, i32, i32) {
    %c0_i32 = arith.constant 0 : i32
    %c0_i32_0 = arith.constant 0 : i32
    return %arg0, %c0_i32, %arg1 : i32, i32, i32
  }
}

</mosaic_0001>

<llo_original>
// kernel: tpu_custom_call.1
$region0: #{tpu_custom_call.1}
  #allocation0 [shape = 'u32[]', space=smem, size = 0x4, offset = 0x4, fixed_abs, tag = 'smem constant byte address 0x4 - core index']
  #allocation1 [shape = 'u32[144,128]{1,0:T(1,128)}', space=vmem, size = 0x12000, scoped, tag = 'internal scratch']
  %s0 = inlined_call_operand.vmem [shape: f32[2,64,16], index: 0, kind: input, shape index: {}]
  %s1 = inlined_call_operand.vmem [shape: f32[8,16], index: 1, kind: input, shape index: {}]
  %s2 = inlined_call_operand.vmem [shape: f32[8,1], index: 2, kind: input, shape index: {}]
  %s3 = inlined_call_operand.hbm [shape: f32[2,8,64], index: 3, kind: output, shape index: {}]
  %s4 = sld [smem:[#allocation0]]
  $region45: #{tpu_custom_call.1} parent=0
    _
  %s6 = ssub.s32 1, %s4
  %s7 = scalar_select 0, %s6, %s4
  $region1: #{tpu_custom_call.1} parent=0
    #allocation2 [shape = 'u8[8192]{0}', space=vmem, size = 0x2000, scoped, tag = 'output window, operand 0']
    #allocation3 [shape = 's32[2]{0}', space=sflag, size = 0x8, scoped, tag = 'scoped memory for tpu_custom_call.1']
    %8 = vsyncpa [#allocation3], 0
    %s9 = scalar_lea.sflag [#allocation3], 1
    %10 = vsyncpa %s9, 0
    loop: start=0, step=1, limit=4
    $region2: #{tpu_custom_call.1} parent=1 // loop_pre_header
      _
    $region3: #{tpu_custom_call.1} parent=1 // loop_header
      %s12 = sphi 0, %s16
      %p13 = scmp.ge.s32.totalorder %s12, 4
      %s19 = sphi 0, %s31
      %s20 = sphi 0, %s27
      %s21 = sphi 0, %s19
      %s22 = sphi 0, %s20
      %s23 = sphi 0, %s21
      %s24 = sphi 0, %s22
      %s36 = sphi 0, %s38
      %s39 = sphi 0, %s36
      %s40 = sphi 0, %s39
      %s56 = sphi 0, %s40
      %s60 = sphi 0, %s60
      %s62 = sphi 0, %s60
      %s63 = sphi 0, %s62
      %s77 = sphi 0, %s63
      %s81 = sphi 0, %s81
      %s83 = sphi 0, %s81
      %s84 = sphi 0, %s83
      %s98 = sphi 0, %s84
      %s106 = sphi 0, %s108
      %s109 = sphi 0, %s106
      %s110 = sphi 0, %s109
      %s126 = sphi 0, %s110
    $region4: #{tpu_custom_call.1} parent=1 // loop_header_branch
      %15 = sbr.rel (%p13) target = $region8
    $region5: #{tpu_custom_call.1} parent=1 // loop_body
      %s17 = ssub.s32 %s12, 1
      %s18 = ssub.s32 %s12, 2
      %s25 = sadd.s32 1, %s20
      %p26 = scmp.ge.s32.totalorder %s25, 1
      %s27 = scalar_select %p26, 0, %s25
      %s28 = sadd.s32 1, %s19
      %s29 = scalar_select %p26, %s28, %s19
      %p30 = scmp.ge.s32.totalorder %s29, 2
      %s31 = scalar_select %p30, 0, %s29
      %s32 = ssub.s32 %s19, %s31
      %s33 = ssub.s32 %s20, %s27
      %s34 = sor.u32 %s32, %s33
      %p35 = scmp.eq.s32.totalorder %s34, 0
      %s37 = sadd.s32 %s36, 1
      %s38 = scalar_select %p35, %s36, %s37
      %p41 = pneg %p35
      %p42 = scmp.eq.s32.totalorder %s12, 1
      %p43 = por %p41, %p42
      %p44 = scmp.ne.s32.totalorder %s36, %s39
      %p45 = scmp.eq.s32.totalorder %s12, 0
      %p46 = por %p44, %p45
      %p47 = scmp.ne.s32.totalorder %s36, %s39
      %p48 = scmp.eq.s32.totalorder %s17, 1
      %p49 = por %p47, %p48
      %p50 = scmp.ne.s32.totalorder %s39, %s40
      %p51 = scmp.eq.s32.totalorder %s17, 0
      %p52 = por %p50, %p51
      %p53 = scmp.ne.s32.totalorder %s39, %s40
      %p54 = scmp.eq.s32.totalorder %s18, 1
      %p55 = por %p53, %p54
      %p57 = scmp.ne.s32.totalorder %s40, %s56
      %p58 = scmp.eq.s32.totalorder %s18, 0
      %p59 = por %p57, %p58
      %s61 = sadd.s32 %s60, 1
      %p64 = scmp.eq.s32.totalorder %s12, 1
      %p65 = scmp.ne.s32.totalorder %s60, %s62
      %p66 = scmp.eq.s32.totalorder %s12, 0
      %p67 = por %p65, %p66
      %p68 = scmp.ne.s32.totalorder %s60, %s62
      %p69 = scmp.eq.s32.totalorder %s17, 1
      %p70 = por %p68, %p69
      %p71 = scmp.ne.s32.totalorder %s62, %s63
      %p72 = scmp.eq.s32.totalorder %s17, 0
      %p73 = por %p71, %p72
      %p74 = scmp.ne.s32.totalorder %s62, %s63
      %p75 = scmp.eq.s32.totalorder %s18, 1
      %p76 = por %p74, %p75
      %p78 = scmp.ne.s32.totalorder %s63, %s77
      %p79 = scmp.eq.s32.totalorder %s18, 0
      %p80 = por %p78, %p79
      %s82 = sadd.s32 %s81, 1
      %p85 = scmp.eq.s32.totalorder %s12, 1
      %p86 = scmp.ne.s32.totalorder %s81, %s83
      %p87 = scmp.eq.s32.totalorder %s12, 0
      %p88 = por %p86, %p87
      %p89 = scmp.ne.s32.totalorder %s81, %s83
      %p90 = scmp.eq.s32.totalorder %s17, 1
      %p91 = por %p89, %p90
      %p92 = scmp.ne.s32.totalorder %s83, %s84
      %p93 = scmp.eq.s32.totalorder %s17, 0
      %p94 = por %p92, %p93
      %p95 = scmp.ne.s32.totalorder %s83, %s84
      %p96 = scmp.eq.s32.totalorder %s18, 1
      %p97 = por %p95, %p96
      %p99 = scmp.ne.s32.totalorder %s84, %s98
      %p100 = scmp.eq.s32.totalorder %s18, 0
      %p101 = por %p99, %p100
      %s102 = ssub.s32 %s19, %s31
      %s103 = ssub.s32 %s20, %s27
      %s104 = sor.u32 %s102, %s103
      %p105 = scmp.eq.s32.totalorder %s104, 0
      %s107 = sadd.s32 %s106, 1
      %s108 = scalar_select %p105, %s106, %s107
      %p111 = pneg %p105
      %p112 = scmp.eq.s32.totalorder %s12, 1
      %p113 = por %p111, %p112
      %p114 = scmp.ne.s32.totalorder %s106, %s109
      %p115 = scmp.eq.s32.totalorder %s12, 0
      %p116 = por %p114, %p115
      %p117 = scmp.ne.s32.totalorder %s106, %s109
      %p118 = scmp.eq.s32.totalorder %s17, 1
      %p119 = por %p117, %p118
      %p120 = scmp.ne.s32.totalorder %s109, %s110
      %p121 = scmp.eq.s32.totalorder %s17, 0
      %p122 = por %p120, %p121
      %p123 = scmp.ne.s32.totalorder %s109, %s110
      %p124 = scmp.eq.s32.totalorder %s18, 1
      %p125 = por %p123, %p124
      %p127 = scmp.ne.s32.totalorder %s110, %s126
      %p128 = scmp.eq.s32.totalorder %s18, 0
      %p129 = por %p127, %p128
      %p130 = scmp.le.s32.totalorder 1, %s12
      %p131 = scmp.lt.s32.totalorder %s12, 3
      %p132 = pnand %p130, %p131
      %p133 = pneg %p132
      // Predicated region
      $region9: #{tpu_custom_call.1} parent=5 // pred_check
        _
      $region10: #{tpu_custom_call.1} parent=5 // pred_check_branch
        %135 = sbr.rel (%p132) target = $region12
      $region11: #{tpu_custom_call.1} parent=5 // pred_region
        %s136 = ssub.s32 %s12, 1
        // Predicated region
        $region13: #{tpu_custom_call.1} parent=11 // pred_check
          %p137 = pneg %p73
        $region14: #{tpu_custom_call.1} parent=11 // pred_check_branch
          %139 = sbr.rel (%p137) target = $region16
        $region15: #{tpu_custom_call.1} parent=11 // pred_region
          _
        $region16: #{tpu_custom_call.1} parent=11 // pred_fallthru
          _
        // Predicated region
        $region17: #{tpu_custom_call.1} parent=11 // pred_check
          %p140 = pneg %p94
        $region18: #{tpu_custom_call.1} parent=11 // pred_check_branch
          %142 = sbr.rel (%p140) target = $region20
        $region19: #{tpu_custom_call.1} parent=11 // pred_region
          _
        $region20: #{tpu_custom_call.1} parent=11 // pred_fallthru
          _
      $region12: #{tpu_custom_call.1} parent=5 // pred_fallthru
        _
      %p143 = scmp.lt.s32.totalorder %s12, 2
      // Predicated region
      $region21: #{tpu_custom_call.1} parent=5 // pred_check
        %p144 = pneg %p143
      $region22: #{tpu_custom_call.1} parent=5 // pred_check_branch
        %146 = sbr.rel (%p144) target = $region24
      $region23: #{tpu_custom_call.1} parent=5 // pred_region
        // Predicated region
        $region25: #{tpu_custom_call.1} parent=23 // pred_check
          %p147 = pneg %p46
        $region26: #{tpu_custom_call.1} parent=23 // pred_check_branch
          %149 = sbr.rel (%p147) target = $region28
        $region27: #{tpu_custom_call.1} parent=23 // pred_region
          %s150 = smul.u32 8, %s20
          %p151 = scmp.lt.s32.totalorder %s19, 1
          %s152 = scalar_select %p151, %s19, 1
          %p153 = scmp.lt.s32.totalorder %s150, 7
          %s154 = scalar_select %p153, %s150, 7
          %s155 = smul.addr %s152, 8
          %s156 = sadd.s32 %s154, %s155
          %s157 = smul.addr %s156, 8
          %s158 = scalar_lea.vmem %s0, %s157
          %s159 = smul.u32 8, %s20
        $region28: #{tpu_custom_call.1} parent=23 // pred_fallthru
          _
      $region24: #{tpu_custom_call.1} parent=5 // pred_fallthru
        _
      %p160 = scmp.le.s32.totalorder 1, %s12
      %p161 = scmp.lt.s32.totalorder %s12, 3
      %p162 = pnand %p160, %p161
      %p163 = pneg %p162
      // Predicated region
      $region29: #{tpu_custom_call.1} parent=5 // pred_check
        _
      $region30: #{tpu_custom_call.1} parent=5 // pred_check_branch
        %165 = sbr.rel (%p162) target = $region32
      $region31: #{tpu_custom_call.1} parent=5 // pred_region
        %s166 = ssub.s32 %s12, 1
        %s167 = smul.u32 8, %s22
        %p168 = scmp.lt.s32.totalorder %s21, 1
        %s169 = scalar_select %p168, %s21, 1
        %p170 = scmp.lt.s32.totalorder %s167, 7
        %s171 = scalar_select %p170, %s167, 7
        %s172 = smul.addr %s169, 8
        %s173 = sadd.s32 %s171, %s172
        %s174 = smul.addr %s173, 8
        %s175 = scalar_lea.vmem %s0, %s174
        %p176 = pneg %p52
        %p177 = pneg %p49
        %p178 = pneg %p73
        %p179 = pneg %p70
        %p180 = pneg %p94
        %p181 = pneg %p91
        %p182 = pneg %p122
        %p183 = pneg %p119
        %s184 = sand.u32 %s109, 1
        %s185 = scalar_lea.sflag [#allocation3], %s184
        %s186 = sand.u32 %s109, 1
        %s187 = smul.addr %s186, 8
        %s188 = scalar_lea.vmem [#allocation2], %s187
        %s189 = smul.u32 8, %s22
        %p190 = scmp.lt.s32.totalorder %s21, 1
        %s191 = scalar_select %p190, %s21, 1
        %p192 = scmp.lt.s32.totalorder %s189, 7
        %s193 = scalar_select %p192, %s189, 7
        %s194 = smul.addr %s191, 8
        %s195 = sadd.s32 %s193, %s194
        %s196 = smul.addr %s195, 8
        %s197 = scalar_lea.vmem %s0, %s196
        %s198 = smul.u32 8, %s22
        %v199 = vld [vmem:[%s1] sm:$0xff]
        %v200 = vld [vmem:[%s2] sm:$0xff]
        %v201 = vld [vmem:[%s197] sm:$0xff]
        %v202 = vld [vmem:[%s197 + $0x8] sm:$0xff]
        %v203 = vld [vmem:[%s197 + $0x10] sm:$0xff]
        %v204 = vld [vmem:[%s197 + $0x18] sm:$0xff]
        %v205 = vld [vmem:[%s197 + $0x20] sm:$0xff]
        %v206 = vld [vmem:[%s197 + $0x28] sm:$0xff]
        %v207 = vld [vmem:[%s197 + $0x30] sm:$0xff]
        %v208 = vld [vmem:[%s197 + $0x38] sm:$0xff]
        %210 = vset.pattern.permute.xlu0 0
        %211 = vperm.xlu0 %210, %v200
        %v212 = vpop.permute.xlu0 %211
        %vm214 = vcmask 130048
        %v216 = vsel %vm214, %v199, 0
        %v219 = vsel %vm214, %v201, 0
        %v222 = vsel %vm214, %v202, 0
        %v225 = vsel %vm214, %v203, 0
        %v228 = vsel %vm214, %v204, 0
        %v231 = vsel %vm214, %v205, 0
        %v234 = vsel %vm214, %v206, 0
        %v237 = vsel %vm214, %v207, 0
        %v240 = vsel %vm214, %v208, 0
        %242 = vmatprep.subr.mxu0 0.0
        %243 = vmatpush1.xpose.msra.mxu0 %v219
        %244 = vmatprep.subr.mxu0 0.0
        %245 = vmatpush1.xpose.msra.mxu0 %v222
        %246 = vmatprep.subr.mxu0 0.0
        %247 = vmatpush1.xpose.msra.mxu0 %v225
        %248 = vmatprep.subr.mxu0 0.0
        %249 = vmatpush1.xpose.msra.mxu0 %v228
        %250 = vmatprep.subr.mxu0 0.0
        %251 = vmatpush1.xpose.msra.mxu0 %v231
        %252 = vmatprep.subr.mxu0 0.0
        %253 = vmatpush1.xpose.msra.mxu0 %v234
        %254 = vmatprep.subr.mxu0 0.0
        %255 = vmatpush1.xpose.msra.mxu0 %v237
        %256 = vmatprep.subr.mxu0 0.0
        %257 = vmatpush1.xpose.msra.mxu0 %v240
        %258 = vmatprep.subr.mxu0 0.0
        %259 = vmatpush1.xpose.msra.mxu0 0.0
        %260 = vmatprep.subr.mxu0 0.0
        %261 = vmatpush1.xpose.msra.mxu0 0.0
        %262 = vmatprep.subr.mxu0 0.0
        %263 = vmatpush1.xpose.msra.mxu0 0.0
        %264 = vmatprep.subr.mxu0 0.0
        %265 = vmatpush1.xpose.msra.mxu0 0.0
        %266 = vmatprep.subr.mxu0 0.0
        %267 = vmatpush1.xpose.msra.mxu0 0.0
        %268 = vmatprep.subr.mxu0 0.0
        %269 = vmatpush1.xpose.msra.mxu0 0.0
        %270 = vmatprep.subr.mxu0 0.0
        %271 = vmatpush1.xpose.msra.mxu0 0.0
        %272 = vmatprep.subr.mxu0 0.0
        %273 = vmatpush1.xpose.msra.mxu0 0.0
        %274 = vmatprep.subr.mxu0 0.0
        %275 = vmatpush1.xpose.msra.mxu0 0.0
        %276 = vmatprep.subr.mxu0 0.0
        %277 = vmatpush1.xpose.msra.mxu0 0.0
        %278 = vmatprep.subr.mxu0 0.0
        %279 = vmatpush1.xpose.msra.mxu0 0.0
        %280 = vmatprep.subr.mxu0 0.0
        %281 = vmatpush1.xpose.msra.mxu0 0.0
        %282 = vmatprep.subr.mxu0 0.0
        %283 = vmatpush1.xpose.msra.mxu0 0.0
        %284 = vmatprep.subr.mxu0 0.0
        %285 = vmatpush1.xpose.msra.mxu0 0.0
        %286 = vmatprep.subr.mxu0 0.0
        %287 = vmatpush1.xpose.msra.mxu0 0.0
        %288 = vmatprep.subr.mxu0 0.0
        %289 = vmatpush1.xpose.msra.mxu0 0.0
        %290 = vmatprep.subr.mxu0 0.0
        %291 = vmatpush1.xpose.msra.mxu0 0.0
        %292 = vmatprep.subr.mxu0 0.0
        %293 = vmatpush1.xpose.msra.mxu0 0.0
        %294 = vmatprep.subr.mxu0 0.0
        %295 = vmatpush1.xpose.msra.mxu0 0.0
        %296 = vmatprep.subr.mxu0 0.0
        %297 = vmatpush1.xpose.msra.mxu0 0.0
        %298 = vmatprep.subr.mxu0 0.0
        %299 = vmatpush1.xpose.msra.mxu0 0.0
        %300 = vmatprep.subr.mxu0 0.0
        %301 = vmatpush1.xpose.msra.mxu0 0.0
        %302 = vmatprep.subr.mxu0 0.0
        %303 = vmatpush1.xpose.msra.mxu0 0.0
        %304 = vmatprep.subr.mxu0 0.0
        %305 = vmatpush1.xpose.msra.mxu0 0.0
        %306 = vmatprep.mubr.f32.mxu0 0.0
        %307 = vmatmul.mubr.f32.gmra.mrb[0].mxu0 %v216
        %v308 = vpop.f32.mrb[0].mxu0
        %v309 = vadd.f32 %v212, %v308
        %v310 = vpop.f32.mrb[0].mxu0
        %311 = vdwg.mxu0
        %vm312 = vcmask 523264
        %313 = vst.msk [vmem:[%s188] sm:$0xff] %vm312, %v309
        %s314 = sand.u32 %s109, 1
        %s315 = scalar_lea.sflag [#allocation3], %s314
        %s316 = sand.u32 %s109, 1
        %s317 = smul.addr %s316, 8
        %s318 = scalar_lea.vmem [#allocation2], %s317
        // Predicated region
        $region33: #{tpu_custom_call.1} parent=31 // pred_check
          %p319 = pneg %p119
        $region34: #{tpu_custom_call.1} parent=31 // pred_check_branch
          %321 = sbr.rel (%p319) target = $region36
        $region35: #{tpu_custom_call.1} parent=31 // pred_region
          %s323 = ssub.s32 128, 128
          %324 = vsyncadd %s315, %s323
          %s325 = sadd.s32 %s22, %s21
          %s326 = smul.addr %s325, 128
          %s327 = scalar_lea.hbm %s3, %s326
          %s329 = sshll.u32 %s318, 4
          %s330 = int_to_ptr.vmem [resolvable:$true] %s329
          %332 = dma.vmem_to_hbm [thread:$0]  %s330, 128, %s327, %s315
        $region36: #{tpu_custom_call.1} parent=31 // pred_fallthru
          _
      $region32: #{tpu_custom_call.1} parent=5 // pred_fallthru
        _
      %p333 = scmp.le.s32.totalorder 2, %s12
      // Predicated region
      $region37: #{tpu_custom_call.1} parent=5 // pred_check
        %p334 = pneg %p333
      $region38: #{tpu_custom_call.1} parent=5 // pred_check_branch
        %336 = sbr.rel (%p334) target = $region40
      $region39: #{tpu_custom_call.1} parent=5 // pred_region
        %s337 = ssub.s32 %s12, 2
        // Predicated region
        $region41: #{tpu_custom_call.1} parent=39 // pred_check
          %p338 = pneg %p125
        $region42: #{tpu_custom_call.1} parent=39 // pred_check_branch
          %340 = sbr.rel (%p338) target = $region44
        $region43: #{tpu_custom_call.1} parent=39 // pred_region
          %s341 = sand.u32 %s110, 1
          %s342 = scalar_lea.sflag [#allocation3], %s341
          %s343 = sand.u32 %s110, 1
          %s344 = smul.addr %s343, 8
          %s345 = scalar_lea.vmem [#allocation2], %s344
          %346 = dma.done %s342, 128
        $region44: #{tpu_custom_call.1} parent=39 // pred_fallthru
          _
      $region40: #{tpu_custom_call.1} parent=5 // pred_fallthru
        _
    $region6: #{tpu_custom_call.1} parent=1 // loop_footer
      %s16 = sadd.s32 1, %s12
    $region7: #{tpu_custom_call.1} parent=1 // loop_footer_branch
      %11 = sbr.rel target = $region3
    $region8: #{tpu_custom_call.1} parent=1 // loop_exit
      _
    %347 = vsyncpa [#allocation3], 1
    %s348 = scalar_lea.sflag [#allocation3], 1
    %349 = vsyncpa %s348, 1

</llo_original>
